<compile_context>
chip_gen: v5e
topology: v5e:2x2
jax: 0.10.0
libtpu: 0.0.40
codegen_flags: <defaults>
</compile_context>

<pallas_src>
import functools

import jax
import jax.numpy as jnp
from jax.experimental import pallas as pl
from jax.experimental.pallas import tpu as pltpu

IN_F = 784
H1, H2, HO = 384, 128, 128      # padded widths of 300, 100, 10
N_CLASSES = 10

_TB_BUCKETS = (8, 16, 32, 64, 128, 256, 512, 1024)


def _round_up(x, m):
    return (x + m - 1) // m * m


def _pick_tb(batch):
    """Largest power-of-two bucket <= max(8, ceil(B/2)): >= 2 grid steps for v7x's
    two TensorCores whenever possible, capped at 1024 rows, tiny compile-cache."""
    half = max(8, _round_up(batch, 8) // 2)
    tb = _TB_BUCKETS[0]
    for cand in _TB_BUCKETS:
        if cand <= half:
            tb = cand
    return tb


def _vmem_limit_bytes(tb, x_itemsize):
    """Explicit VMEM budget: double-buffered x/out tiles, double-buffered resident
    bf16 weights / f32 biases, f32 intermediates, plus compiler-scratch headroom.
    Clamped to [32, 64] MiB — valid on every generation (v7x: 64 MiB per TC)."""
    xo = 2 * tb * (IN_F * x_itemsize + HO * 4)
    w = 2 * (2 * (IN_F * H1 + H1 * H2 + H2 * HO) + 4 * (H1 + H2 + HO))
    act = 4 * tb * (H1 + H2 + HO)
    total = xo + w + 3 * act + (8 << 20)
    return int(min(max(total, 32 << 20), 64 << 20))


def _lenet_kernel(x_ref, w1_ref, b1_ref, w2_ref, b2_ref, w3_ref, b3_ref, o_ref):
    # fc1 + relu: bf16 operands on the MXU, f32 accumulation + f32 epilogue.
    x = x_ref[...].astype(jnp.bfloat16)
    h1 = jnp.dot(x, w1_ref[...], preferred_element_type=jnp.float32) + b1_ref[...]
    h1 = jnp.maximum(h1, 0.0)
    # fc2 + relu
    h2 = jnp.dot(h1.astype(jnp.bfloat16), w2_ref[...],
                 preferred_element_type=jnp.float32) + b2_ref[...]
    h2 = jnp.maximum(h2, 0.0)
    # fc3 (lane-dense 128-wide logits block; only first 10 lanes are real)
    z = jnp.dot(h2.astype(jnp.bfloat16), w3_ref[...],
                preferred_element_type=jnp.float32) + b3_ref[...]

    # log_softmax over the 10 real classes; padded lanes excluded from max / sum.
    lane = jax.lax.broadcasted_iota(jnp.int32, z.shape, 1)
    valid = lane < N_CLASSES
    z = jnp.where(valid, z, -jnp.inf)
    z_max = jnp.max(z, axis=-1, keepdims=True)
    z_shift = z - z_max
    lse = jnp.log(jnp.sum(jnp.where(valid, jnp.exp(z_shift), 0.0),
                          axis=-1, keepdims=True))
    o_ref[...] = jnp.where(valid, z_shift - lse, 0.0)


def _pallas_forward(x, w1, b1, w2, b2, w3, b3, *, tb):
    """x: (B_pad, 784) with B_pad % tb == 0.  Returns (B_pad, 128) f32 log-prob block."""
    b_pad = x.shape[0]
    grid = (b_pad // tb,)

    batch_spec = pl.BlockSpec((tb, IN_F), lambda i: (i, 0))
    out_spec = pl.BlockSpec((tb, HO), lambda i: (i, 0))
    # Constant index_map -> weights/biases stay VMEM-resident across grid steps.
    resident = lambda shape: pl.BlockSpec(shape, lambda i: (0, 0))  # noqa: E731

    flops = 2 * b_pad * (IN_F * H1 + H1 * H2 + H2 * HO)
    bytes_accessed = (x.size * x.dtype.itemsize        # bf16 or f32 input stream
                      + 4 * b_pad * HO                 # f32 logits block
                      + 2 * (IN_F * H1 + H1 * H2 + H2 * HO)   # bf16 weights
                      + 4 * (H1 + H2 + HO))            # f32 biases
    transcendentals = b_pad * (HO + 1)                 # exp on all 128 lanes + log

    return pl.pallas_call(
        _lenet_kernel,
        out_shape=jax.ShapeDtypeStruct((b_pad, HO), jnp.float32),
        grid=grid,
        in_specs=[
            batch_spec,                 # x
            resident((IN_F, H1)),       # w1 (bf16)
            resident((1, H1)),          # b1 (f32)
            resident((H1, H2)),         # w2 (bf16)
            resident((1, H2)),          # b2 (f32)
            resident((H2, HO)),         # w3 (bf16)
            resident((1, HO)),          # b3 (f32)
        ],
        out_specs=out_spec,
        compiler_params=pltpu.CompilerParams(
            dimension_semantics=("parallel",),
            vmem_limit_bytes=_vmem_limit_bytes(tb, x.dtype.itemsize),
        ),
        cost_estimate=pl.CostEstimate(
            flops=flops,
            transcendentals=transcendentals,
            bytes_accessed=bytes_accessed,
        ),
    )(x, w1, b1, w2, b2, w3, b3)


def prepare_params(params):
    """One-time glue: transpose PyTorch (out, in) weights to (in, out), zero-pad to
    lane-aligned shapes, cast weights to bf16 (biases stay f32).  Do this once."""
    def pad_w(w, in_p, out_p):
        out_f, in_f = w.shape
        wt = jnp.asarray(w, jnp.float32).T              # (in, out)
        wp = jnp.zeros((in_p, out_p), jnp.float32).at[:in_f, :out_f].set(wt)
        return wp.astype(jnp.bfloat16)

    def pad_b(b, out_p):
        out_f = b.shape[0]
        return jnp.zeros((1, out_p), jnp.float32).at[0, :out_f].set(
            jnp.asarray(b, jnp.float32))

    return (
        pad_w(params["w1"], IN_F, H1), pad_b(params["b1"], H1),
        pad_w(params["w2"], H1, H2),   pad_b(params["b2"], H2),
        pad_w(params["w3"], H2, HO),   pad_b(params["b3"], HO),
    )


@functools.partial(jax.jit, static_argnames=("tb",))
def _forward_jit(x_nchw, w1, b1, w2, b2, w3, b3, *, tb):
    B = x_nchw.shape[0]
    x = x_nchw.reshape(B, IN_F)          # keeps caller dtype (f32 or bf16)
    b_pad = _round_up(B, tb)
    if b_pad != B:
        x = jnp.pad(x, ((0, b_pad - B), (0, 0)))
    out = _pallas_forward(x, w1, b1, w2, b2, w3, b3, tb=tb)
    # Slice fuses under this jit — no standalone re-read pass of the 128-wide block.
    return out[:B, :N_CLASSES]


def lenet_300_100_forward(x_nchw, prepared, tb=None):
    """x_nchw: (B, 1, 28, 28).  prepared: output of prepare_params."""
    if tb is None:
        tb = _pick_tb(x_nchw.shape[0])
    return _forward_jit(x_nchw, *prepared, tb=tb)


def init_params(key):
    """Deterministic init mimicking PyTorch nn.Linear default (uniform +-1/sqrt(fan_in))."""
    def linear(key, out_f, in_f):
        kw, kb = jax.random.split(key)
        bound = 1.0 / jnp.sqrt(in_f)
        w = jax.random.uniform(kw, (out_f, in_f), jnp.float32, -bound, bound)
        b = jax.random.uniform(kb, (out_f,), jnp.float32, -bound, bound)
        return w, b

    k1, k2, k3 = jax.random.split(key, 3)
    w1, b1 = linear(k1, 300, 784)
    w2, b2 = linear(k2, 100, 300)
    w3, b3 = linear(k3, 10, 100)
    return {"w1": w1, "b1": b1, "w2": w2, "b2": b2, "w3": w3, "b3": b3}


def _reference(x_nchw, p):
    x = x_nchw.reshape(x_nchw.shape[0], IN_F).astype(jnp.float32)
    h1 = jnp.maximum(x @ p["w1"].T + p["b1"], 0.0)
    h2 = jnp.maximum(h1 @ p["w2"].T + p["b2"], 0.0)
    z = h2 @ p["w3"].T + p["b3"]
    return jax.nn.log_softmax(z, axis=1)


if __name__ == "__main__":
    key = jax.random.PRNGKey(0)
    kx, kp = jax.random.split(key)
    params = init_params(kp)
    prepared = prepare_params(params)

    # Small batch, NCHW like MNIST inputs fed to this module.
    x = jax.random.normal(kx, (2, 1, 28, 28), jnp.float32)
    out = jax.block_until_ready(lenet_300_100_forward(x, prepared))
    ref = _reference(x, params)
    assert out.shape == (2, 10)
    # bf16 MXU operands vs f32 reference -> relaxed tolerance.
    assert jnp.allclose(out, ref, atol=5e-2, rtol=5e-2)

    # Second check: multi-step batch grid + ragged-tail padding + explicit tb.
    x2 = jax.random.normal(kx, (40, 1, 28, 28), jnp.float32)
    out2 = jax.block_until_ready(lenet_300_100_forward(x2, prepared, tb=16))
    ref2 = _reference(x2, params)
    assert out2.shape == (40, 10)
    assert jnp.allclose(out2, ref2, atol=5e-2, rtol=5e-2)

    print("KERNEL_OK")
</pallas_src>

<mosaic_0001>
module attributes {stable_mosaic.version = 11 : i64} {
  func.func @_lenet_kernel(%arg0: i32, %arg1: memref<8x784xf32, #tpu.memory_space<vmem>>, %arg2: memref<784x384xbf16, #tpu.memory_space<vmem>>, %arg3: memref<1x384xf32, #tpu.memory_space<vmem>>, %arg4: memref<384x128xbf16, #tpu.memory_space<vmem>>, %arg5: memref<1x128xf32, #tpu.memory_space<vmem>>, %arg6: memref<128x128xbf16, #tpu.memory_space<vmem>>, %arg7: memref<1x128xf32, #tpu.memory_space<vmem>>, %arg8: memref<8x128xf32, #tpu.memory_space<vmem>>) attributes {dimension_semantics = [#tpu.dimension_semantics<parallel>], iteration_bounds = array<i64: 1>, scalar_prefetch = 0 : i64, scratch_operands = 0 : i64, tpu.core_type = #tpu.core_type<tc>, window_params = [{transform_indices = @transform_0, window_bounds = array<i64: 8, 784>}, {pipeline_mode = #tpu.pipeline_mode<synchronous>, transform_indices = @transform_1, window_bounds = array<i64: 784, 384>}, {pipeline_mode = #tpu.pipeline_mode<synchronous>, transform_indices = @transform_2, window_bounds = array<i64: 1, 384>}, {pipeline_mode = #tpu.pipeline_mode<synchronous>, transform_indices = @transform_3, window_bounds = array<i64: 384, 128>}, {pipeline_mode = #tpu.pipeline_mode<synchronous>, transform_indices = @transform_4, window_bounds = array<i64: 1, 128>}, {pipeline_mode = #tpu.pipeline_mode<synchronous>, transform_indices = @transform_5, window_bounds = array<i64: 128, 128>}, {pipeline_mode = #tpu.pipeline_mode<synchronous>, transform_indices = @transform_6, window_bounds = array<i64: 1, 128>}, {transform_indices = @transform_7, window_bounds = array<i64: 8, 128>}]} {
    %c0 = arith.constant 0 : index
    %c0_0 = arith.constant 0 : index
    %0 = vector.load %arg1[%c0, %c0_0] : memref<8x784xf32, #tpu.memory_space<vmem>>, vector<8x784xf32>
    %1 = arith.truncf %0 : vector<8x784xf32> to vector<8x784xbf16>
    %c0_1 = arith.constant 0 : index
    %c0_2 = arith.constant 0 : index
    %2 = vector.load %arg2[%c0_1, %c0_2] : memref<784x384xbf16, #tpu.memory_space<vmem>>, vector<784x384xbf16>
    %cst = arith.constant dense<0.000000e+00> : vector<8x384xf32>
    %3 = tpu.matmul %1, %2, %cst {dimension_numbers = #tpu.dot_dimension_numbers<[1], [0], [0], [1], [0, 0, 1, 1], [], []>} : vector<8x784xbf16>, vector<784x384xbf16>, vector<8x384xf32> -> vector<8x384xf32>
    %c0_3 = arith.constant 0 : index
    %c0_4 = arith.constant 0 : index
    %4 = vector.load %arg3[%c0_3, %c0_4] : memref<1x384xf32, #tpu.memory_space<vmem>>, vector<1x384xf32>
    %5 = vector.broadcast %4 : vector<1x384xf32> to vector<8x384xf32>
    %6 = arith.addf %3, %5 : vector<8x384xf32>
    %cst_5 = arith.constant 0.000000e+00 : f32
    %7 = vector.broadcast %cst_5 : f32 to vector<8x384xf32>
    %8 = arith.maximumf %6, %7 : vector<8x384xf32>
    %9 = arith.truncf %8 : vector<8x384xf32> to vector<8x384xbf16>
    %c0_6 = arith.constant 0 : index
    %c0_7 = arith.constant 0 : index
    %10 = vector.load %arg4[%c0_6, %c0_7] : memref<384x128xbf16, #tpu.memory_space<vmem>>, vector<384x128xbf16>
    %cst_8 = arith.constant dense<0.000000e+00> : vector<8x128xf32>
    %11 = tpu.matmul %9, %10, %cst_8 {dimension_numbers = #tpu.dot_dimension_numbers<[1], [0], [0], [1], [0, 0, 1, 1], [], []>} : vector<8x384xbf16>, vector<384x128xbf16>, vector<8x128xf32> -> vector<8x128xf32>
    %c0_9 = arith.constant 0 : index
    %c0_10 = arith.constant 0 : index
    %12 = vector.load %arg5[%c0_9, %c0_10] : memref<1x128xf32, #tpu.memory_space<vmem>>, vector<1x128xf32>
    %13 = vector.broadcast %12 : vector<1x128xf32> to vector<8x128xf32>
    %14 = arith.addf %11, %13 : vector<8x128xf32>
    %cst_11 = arith.constant 0.000000e+00 : f32
    %15 = vector.broadcast %cst_11 : f32 to vector<8x128xf32>
    %16 = arith.maximumf %14, %15 : vector<8x128xf32>
    %17 = arith.truncf %16 : vector<8x128xf32> to vector<8x128xbf16>
    %c0_12 = arith.constant 0 : index
    %c0_13 = arith.constant 0 : index
    %18 = vector.load %arg6[%c0_12, %c0_13] : memref<128x128xbf16, #tpu.memory_space<vmem>>, vector<128x128xbf16>
    %cst_14 = arith.constant dense<0.000000e+00> : vector<8x128xf32>
    %19 = tpu.matmul %17, %18, %cst_14 {dimension_numbers = #tpu.dot_dimension_numbers<[1], [0], [0], [1], [0, 0, 1, 1], [], []>} : vector<8x128xbf16>, vector<128x128xbf16>, vector<8x128xf32> -> vector<8x128xf32>
    %c0_15 = arith.constant 0 : index
    %c0_16 = arith.constant 0 : index
    %20 = vector.load %arg7[%c0_15, %c0_16] : memref<1x128xf32, #tpu.memory_space<vmem>>, vector<1x128xf32>
    %21 = vector.broadcast %20 : vector<1x128xf32> to vector<8x128xf32>
    %22 = arith.addf %19, %21 : vector<8x128xf32>
    %23 = tpu.iota {dimensions = array<i32: 1>} : vector<8x128xi32>
    %c10_i32 = arith.constant 10 : i32
    %24 = vector.broadcast %c10_i32 : i32 to vector<8x128xi32>
    %25 = arith.cmpi slt, %23, %24 : vector<8x128xi32>
    %cst_17 = arith.constant 0xFF800000 : f32
    %26 = vector.broadcast %cst_17 : f32 to vector<8x128xf32>
    %27 = arith.select %25, %22, %26 : vector<8x128xi1>, vector<8x128xf32>
    %cst_18 = arith.constant dense<0xFF800000> : vector<8xf32>
    %28 = vector.multi_reduction <maximumf>, %27, %cst_18 [1] : vector<8x128xf32> to vector<8xf32>
    %29 = vector.shape_cast %28 : vector<8xf32> to vector<8x1xf32>
    %30 = vector.broadcast %29 : vector<8x1xf32> to vector<8x128xf32>
    %31 = arith.subf %27, %30 : vector<8x128xf32>
    %32 = math.exp %31 : vector<8x128xf32>
    %cst_19 = arith.constant 0.000000e+00 : f32
    %33 = vector.broadcast %cst_19 : f32 to vector<8x128xf32>
    %34 = arith.select %25, %32, %33 : vector<8x128xi1>, vector<8x128xf32>
    %cst_20 = arith.constant dense<0.000000e+00> : vector<8xf32>
    %35 = vector.multi_reduction <add>, %34, %cst_20 [1] : vector<8x128xf32> to vector<8xf32>
    %36 = vector.shape_cast %35 : vector<8xf32> to vector<8x1xf32>
    %37 = math.log %36 : vector<8x1xf32>
    %38 = vector.broadcast %37 : vector<8x1xf32> to vector<8x128xf32>
    %39 = arith.subf %31, %38 : vector<8x128xf32>
    %cst_21 = arith.constant 0.000000e+00 : f32
    %40 = vector.broadcast %cst_21 : f32 to vector<8x128xf32>
    %41 = arith.select %25, %39, %40 : vector<8x128xi1>, vector<8x128xf32>
    %c0_22 = arith.constant 0 : index
    %c0_23 = arith.constant 0 : index
    %42 = vector.load %arg8[%c0_22, %c0_23] : memref<8x128xf32, #tpu.memory_space<vmem>>, vector<8x128xf32>
    tpu.vector_store %arg8[%c0_22, %c0_23], %41 {strides = array<i32>} : memref<8x128xf32, #tpu.memory_space<vmem>>, vector<8x128xf32>,
    return
  }
  func.func @transform_0(%arg0: i32) -> (i32, i32) {
    %c0_i32 = arith.constant 0 : i32
    %c0_i32_0 = arith.constant 0 : i32
    return %arg0, %c0_i32 : i32, i32
  }
  func.func @transform_1(%arg0: i32) -> (i32, i32) {
    %c0_i32 = arith.constant 0 : i32
    %c0_i32_0 = arith.constant 0 : i32
    %c0_i32_1 = arith.constant 0 : i32
    return %c0_i32, %c0_i32_0 : i32, i32
  }
  func.func @transform_2(%arg0: i32) -> (i32, i32) {
    %c0_i32 = arith.constant 0 : i32
    %c0_i32_0 = arith.constant 0 : i32
    %c0_i32_1 = arith.constant 0 : i32
    return %c0_i32, %c0_i32_0 : i32, i32
  }
  func.func @transform_3(%arg0: i32) -> (i32, i32) {
    %c0_i32 = arith.constant 0 : i32
    %c0_i32_0 = arith.constant 0 : i32
    %c0_i32_1 = arith.constant 0 : i32
    return %c0_i32, %c0_i32_0 : i32, i32
  }
  func.func @transform_4(%arg0: i32) -> (i32, i32) {
    %c0_i32 = arith.constant 0 : i32
    %c0_i32_0 = arith.constant 0 : i32
    %c0_i32_1 = arith.constant 0 : i32
    return %c0_i32, %c0_i32_0 : i32, i32
  }
  func.func @transform_5(%arg0: i32) -> (i32, i32) {
    %c0_i32 = arith.constant 0 : i32
    %c0_i32_0 = arith.constant 0 : i32
    %c0_i32_1 = arith.constant 0 : i32
    return %c0_i32, %c0_i32_0 : i32, i32
  }
  func.func @transform_6(%arg0: i32) -> (i32, i32) {
    %c0_i32 = arith.constant 0 : i32
    %c0_i32_0 = arith.constant 0 : i32
    %c0_i32_1 = arith.constant 0 : i32
    return %c0_i32, %c0_i32_0 : i32, i32
  }
  func.func @transform_7(%arg0: i32) -> (i32, i32) {
    %c0_i32 = arith.constant 0 : i32
    %c0_i32_0 = arith.constant 0 : i32
    return %arg0, %c0_i32 : i32, i32
  }
}

</mosaic_0001>

<llo_original>
// kernel: _forward_jit.1
$region0: #{_forward_jit.1}
  #allocation0 [shape = 'u32[]', space=smem, size = 0x4, offset = 0x4, fixed_abs, tag = 'smem constant byte address 0x4 - core index']
  #allocation1 [shape = 'u32[72,128]{1,0:T(1,128)}', space=vmem, size = 0x9000, scoped, tag = 'internal scratch']
  %s0 = inlined_call_operand.vmem [shape: f32[8,784], index: 0, kind: input, shape index: {}]
  %s1 = inlined_call_operand.hbm [shape: bf16[784,384], index: 1, kind: input, shape index: {}]
  %s2 = inlined_call_operand.vmem [shape: f32[1,384], index: 2, kind: input, shape index: {}]
  %s3 = inlined_call_operand.vmem [shape: bf16[384,128], index: 3, kind: input, shape index: {}]
  %s4 = inlined_call_operand.vmem [shape: f32[1,128], index: 4, kind: input, shape index: {}]
  %s5 = inlined_call_operand.vmem [shape: bf16[128,128], index: 5, kind: input, shape index: {}]
  %s6 = inlined_call_operand.vmem [shape: f32[1,128], index: 6, kind: input, shape index: {}]
  %s7 = inlined_call_operand.vmem [shape: f32[8,128], index: 7, kind: output, shape index: {}]
  %s8 = sld [smem:[#allocation0]]
  $region42: #{_forward_jit.1} parent=0
    _
  %s10 = ssub.s32 1, %s8
  %s11 = scalar_select 0, %s10, %s8
  $region1: #{_forward_jit.1} parent=0
    #allocation2 [shape = 'u8[602112]{0}', space=vmem, size = 0x93000, scoped, tag = 'input window, operand 1, single buffered']
    #allocation3 [shape = 's32[1]{0}', space=sflag, size = 0x4, scoped, tag = 'scoped memory for _forward_jit.1']
    %12 = vsyncpa [#allocation3], 0
    // Predicated region
    $region2: #{_forward_jit.1} parent=1 // pred_check
      _
    $region3: #{_forward_jit.1} parent=1 // pred_check_branch
      %14 = sbr.rel (0) target = $region5
    $region4: #{_forward_jit.1} parent=1 // pred_region
      _
    $region5: #{_forward_jit.1} parent=1 // pred_fallthru
      _
    // Predicated region
    $region6: #{_forward_jit.1} parent=1 // pred_check
      _
    $region7: #{_forward_jit.1} parent=1 // pred_check_branch
      %16 = sbr.rel (0) target = $region9
    $region8: #{_forward_jit.1} parent=1 // pred_region
      %18 = vsyncadd [#allocation3], 0
      %s19 = sshll.u32 %s1, 4
      %s20 = int_to_ptr.hbm [resolvable:$true] %s19
      %s21 = sshll.u32 [#allocation2], 4
      %s22 = int_to_ptr.vmem [resolvable:$true] %s21
      %27 = dma.hbm_to_vmem [thread:$0]  %s20, 18816, %s22, [#allocation3], 192, 192, 12
    $region9: #{_forward_jit.1} parent=1 // pred_fallthru
      _
    // Predicated region
    $region10: #{_forward_jit.1} parent=1 // pred_check
      _
    $region11: #{_forward_jit.1} parent=1 // pred_check_branch
      %29 = sbr.rel (0) target = $region13
    $region12: #{_forward_jit.1} parent=1 // pred_region
      _
    $region13: #{_forward_jit.1} parent=1 // pred_fallthru
      _
    // Predicated region
    $region14: #{_forward_jit.1} parent=1 // pred_check
      _
    $region15: #{_forward_jit.1} parent=1 // pred_check_branch
      %31 = sbr.rel (0) target = $region17
    $region16: #{_forward_jit.1} parent=1 // pred_region
      _
    $region17: #{_forward_jit.1} parent=1 // pred_fallthru
      _
    // Predicated region
    $region18: #{_forward_jit.1} parent=1 // pred_check
      _
    $region19: #{_forward_jit.1} parent=1 // pred_check_branch
      %33 = sbr.rel (0) target = $region21
    $region20: #{_forward_jit.1} parent=1 // pred_region
      _
    $region21: #{_forward_jit.1} parent=1 // pred_fallthru
      _
    // Predicated region
    $region22: #{_forward_jit.1} parent=1 // pred_check
      _
    $region23: #{_forward_jit.1} parent=1 // pred_check_branch
      %35 = sbr.rel (0) target = $region25
    $region24: #{_forward_jit.1} parent=1 // pred_region
      _
    $region25: #{_forward_jit.1} parent=1 // pred_fallthru
      _
    // Predicated region
    $region26: #{_forward_jit.1} parent=1 // pred_check
      _
    $region27: #{_forward_jit.1} parent=1 // pred_check_branch
      %37 = sbr.rel (0) target = $region29
    $region28: #{_forward_jit.1} parent=1 // pred_region
      _
    $region29: #{_forward_jit.1} parent=1 // pred_fallthru
      _
    // Predicated region
    $region30: #{_forward_jit.1} parent=1 // pred_check
      _
    $region31: #{_forward_jit.1} parent=1 // pred_check_branch
      %39 = sbr.rel (0) target = $region33
    $region32: #{_forward_jit.1} parent=1 // pred_region
      %41 = dma.done [#allocation3], 18816
    $region33: #{_forward_jit.1} parent=1 // pred_fallthru
      _
    %v43 = vld [vmem:[%s0] sm:$0xff]
    %v44 = vld [vmem:[%s0 + $0x8] sm:$0xff]
    %v45 = vld [vmem:[%s0 + $0x10] sm:$0xff]
    %v46 = vld [vmem:[%s0 + $0x18] sm:$0xff]
    %v47 = vld [vmem:[%s0 + $0x20] sm:$0xff]
    %v48 = vld [vmem:[%s0 + $0x28] sm:$0xff]
    %v49 = vld [vmem:[%s0 + $0x30] sm:$0xff]
    %v50 = vpack.c.bf16 %v43, %v43
    %v51 = vpack.c.bf16 %v44, %v44
    %v52 = vpack.c.bf16 %v45, %v45
    %v53 = vpack.c.bf16 %v46, %v46
    %v54 = vpack.c.bf16 %v47, %v47
    %v55 = vpack.c.bf16 %v48, %v48
    %v56 = vpack.c.bf16 %v49, %v49
    %v57 = vld [vmem:[#allocation2] sm:$0xff]
    %v58 = vld [vmem:[#allocation2 + $0x8] sm:$0xf]
    %v59 = vld [vmem:[#allocation2 + $0xc] sm:$0xff]
    %v60 = vld [vmem:[#allocation2 + $0x14] sm:$0xf]
    %v61 = vld [vmem:[#allocation2 + $0x18] sm:$0xff]
    %v62 = vld [vmem:[#allocation2 + $0x20] sm:$0xf]
    %v63 = vld [vmem:[#allocation2 + $0x24] sm:$0xff]
    %v64 = vld [vmem:[#allocation2 + $0x2c] sm:$0xf]
    %v65 = vld [vmem:[#allocation2 + $0x30] sm:$0xff]
    %v66 = vld [vmem:[#allocation2 + $0x38] sm:$0xf]
    %v67 = vld [vmem:[#allocation2 + $0x3c] sm:$0xff]
    %v68 = vld [vmem:[#allocation2 + $0x44] sm:$0xf]
    %v69 = vld [vmem:[#allocation2 + $0x48] sm:$0xff]
    %v70 = vld [vmem:[#allocation2 + $0x50] sm:$0xf]
    %v71 = vld [vmem:[#allocation2 + $0x54] sm:$0xff]
    %v72 = vld [vmem:[#allocation2 + $0x5c] sm:$0xf]
    %v73 = vld [vmem:[#allocation2 + $0x60] sm:$0xff]
    %v74 = vld [vmem:[#allocation2 + $0x68] sm:$0xf]
    %v75 = vld [vmem:[#allocation2 + $0x6c] sm:$0xff]
    %v76 = vld [vmem:[#allocation2 + $0x74] sm:$0xf]
    %v77 = vld [vmem:[#allocation2 + $0x78] sm:$0xff]
    %v78 = vld [vmem:[#allocation2 + $0x80] sm:$0xf]
    %v79 = vld [vmem:[#allocation2 + $0x84] sm:$0xff]
    %v80 = vld [vmem:[#allocation2 + $0x8c] sm:$0xf]
    %v81 = vld [vmem:[#allocation2 + $0x90] sm:$0xff]
    %v82 = vld [vmem:[#allocation2 + $0x98] sm:$0xf]
    %v83 = vld [vmem:[#allocation2 + $0x9c] sm:$0xff]
    %v84 = vld [vmem:[#allocation2 + $0xa4] sm:$0xf]
    %v85 = vld [vmem:[#allocation2 + $0xa8] sm:$0xff]
    %v86 = vld [vmem:[#allocation2 + $0xb0] sm:$0xf]
    %v87 = vld [vmem:[#allocation2 + $0xb4] sm:$0xff]
    %v88 = vld [vmem:[#allocation2 + $0xbc] sm:$0xf]
    %v89 = vld [vmem:[#allocation2 + $0xc0] sm:$0xff]
    %v90 = vld [vmem:[#allocation2 + $0xc8] sm:$0xf]
    %v91 = vld [vmem:[#allocation2 + $0xcc] sm:$0xff]
    %v92 = vld [vmem:[#allocation2 + $0xd4] sm:$0xf]
    %v93 = vld [vmem:[#allocation2 + $0xd8] sm:$0xff]
    %v94 = vld [vmem:[#allocation2 + $0xe0] sm:$0xf]
    %v95 = vld [vmem:[#allocation2 + $0xe4] sm:$0xff]
    %v96 = vld [vmem:[#allocation2 + $0xec] sm:$0xf]
    %v97 = vld [vmem:[#allocation2 + $0xf0] sm:$0xff]
    %v98 = vld [vmem:[#allocation2 + $0xf8] sm:$0xf]
    %v99 = vld [vmem:[#allocation2 + $0xfc] sm:$0xff]
    %v100 = vld [vmem:[#allocation2 + $0x104] sm:$0xf]
    %v101 = vld [vmem:[#allocation2 + $0x108] sm:$0xff]
    %v102 = vld [vmem:[#allocation2 + $0x110] sm:$0xf]
    %v103 = vld [vmem:[#allocation2 + $0x114] sm:$0xff]
    %v104 = vld [vmem:[#allocation2 + $0x11c] sm:$0xf]
    %v105 = vld [vmem:[#allocation2 + $0x120] sm:$0xff]
    %v106 = vld [vmem:[#allocation2 + $0x128] sm:$0xf]
    %v107 = vld [vmem:[#allocation2 + $0x12c] sm:$0xff]
    %v108 = vld [vmem:[#allocation2 + $0x134] sm:$0xf]
    %v109 = vld [vmem:[#allocation2 + $0x138] sm:$0xff]
    %v110 = vld [vmem:[#allocation2 + $0x140] sm:$0xf]
    %v111 = vld [vmem:[#allocation2 + $0x144] sm:$0xff]
    %v112 = vld [vmem:[#allocation2 + $0x14c] sm:$0xf]
    %v113 = vld [vmem:[#allocation2 + $0x150] sm:$0xff]
    %v114 = vld [vmem:[#allocation2 + $0x158] sm:$0xf]
    %v115 = vld [vmem:[#allocation2 + $0x15c] sm:$0xff]
    %v116 = vld [vmem:[#allocation2 + $0x164] sm:$0xf]
    %v117 = vld [vmem:[#allocation2 + $0x168] sm:$0xff]
    %v118 = vld [vmem:[#allocation2 + $0x170] sm:$0xf]
    %v119 = vld [vmem:[#allocation2 + $0x174] sm:$0xff]
    %v120 = vld [vmem:[#allocation2 + $0x17c] sm:$0xf]
    %v121 = vld [vmem:[#allocation2 + $0x180] sm:$0xff]
    %v122 = vld [vmem:[#allocation2 + $0x188] sm:$0xf]
    %v123 = vld [vmem:[#allocation2 + $0x18c] sm:$0xff]
    %v124 = vld [vmem:[#allocation2 + $0x194] sm:$0xf]
    %v125 = vld [vmem:[#allocation2 + $0x198] sm:$0xff]
    %v126 = vld [vmem:[#allocation2 + $0x1a0] sm:$0xf]
    %v127 = vld [vmem:[#allocation2 + $0x1a4] sm:$0xff]
    %v128 = vld [vmem:[#allocation2 + $0x1ac] sm:$0xf]
    %v129 = vld [vmem:[#allocation2 + $0x1b0] sm:$0xff]
    %v130 = vld [vmem:[#allocation2 + $0x1b8] sm:$0xf]
    %v131 = vld [vmem:[#allocation2 + $0x1bc] sm:$0xff]
    %v132 = vld [vmem:[#allocation2 + $0x1c4] sm:$0xf]
    %v133 = vld [vmem:[#allocation2 + $0x1c8] sm:$0xff]
    %v134 = vld [vmem:[#allocation2 + $0x1d0] sm:$0xf]
    %v135 = vld [vmem:[#allocation2 + $0x1d4] sm:$0xff]
    %v136 = vld [vmem:[#allocation2 + $0x1dc] sm:$0xf]
    %v137 = vld [vmem:[#allocation2 + $0x1e0] sm:$0xff]
    %v138 = vld [vmem:[#allocation2 + $0x1e8] sm:$0xf]
    %v139 = vld [vmem:[#allocation2 + $0x1ec] sm:$0xff]
    %v140 = vld [vmem:[#allocation2 + $0x1f4] sm:$0xf]
    %v141 = vld [vmem:[#allocation2 + $0x1f8] sm:$0xff]
    %v142 = vld [vmem:[#allocation2 + $0x200] sm:$0xf]
    %v143 = vld [vmem:[#allocation2 + $0x204] sm:$0xff]
    %v144 = vld [vmem:[#allocation2 + $0x20c] sm:$0xf]
    %v145 = vld [vmem:[#allocation2 + $0x210] sm:$0xff]
    %v146 = vld [vmem:[#allocation2 + $0x218] sm:$0xf]
    %v147 = vld [vmem:[#allocation2 + $0x21c] sm:$0xff]
    %v148 = vld [vmem:[#allocation2 + $0x224] sm:$0xf]
    %v149 = vld [vmem:[#allocation2 + $0x228] sm:$0xff]
    %v150 = vld [vmem:[#allocation2 + $0x230] sm:$0xf]
    %v151 = vld [vmem:[#allocation2 + $0x234] sm:$0xff]
    %v152 = vld [vmem:[#allocation2 + $0x23c] sm:$0xf]
    %v153 = vld [vmem:[#allocation2 + $0x240] sm:$0xff]
    %v154 = vld [vmem:[#allocation2 + $0x248] sm:$0xf]
    %v155 = vld [vmem:[#allocation2 + $0x24c] sm:$0xff]
    %v156 = vld [vmem:[#allocation2 + $0x254] sm:$0xf]
    %v157 = vld [vmem:[#allocation2 + $0x258] sm:$0xff]
    %v158 = vld [vmem:[#allocation2 + $0x260] sm:$0xf]
    %v159 = vld [vmem:[#allocation2 + $0x264] sm:$0xff]
    %v160 = vld [vmem:[#allocation2 + $0x26c] sm:$0xf]
    %v161 = vld [vmem:[#allocation2 + $0x270] sm:$0xff]
    %v162 = vld [vmem:[#allocation2 + $0x278] sm:$0xf]
    %v163 = vld [vmem:[#allocation2 + $0x27c] sm:$0xff]
    %v164 = vld [vmem:[#allocation2 + $0x284] sm:$0xf]
    %v165 = vld [vmem:[#allocation2 + $0x288] sm:$0xff]
    %v166 = vld [vmem:[#allocation2 + $0x290] sm:$0xf]
    %v167 = vld [vmem:[#allocation2 + $0x294] sm:$0xff]
    %v168 = vld [vmem:[#allocation2 + $0x29c] sm:$0xf]
    %v169 = vld [vmem:[#allocation2 + $0x2a0] sm:$0xff]
    %v170 = vld [vmem:[#allocation2 + $0x2a8] sm:$0xf]
    %v171 = vld [vmem:[#allocation2 + $0x2ac] sm:$0xff]
    %v172 = vld [vmem:[#allocation2 + $0x2b4] sm:$0xf]
    %v173 = vld [vmem:[#allocation2 + $0x2b8] sm:$0xff]
    %v174 = vld [vmem:[#allocation2 + $0x2c0] sm:$0xf]
    %v175 = vld [vmem:[#allocation2 + $0x2c4] sm:$0xff]
    %v176 = vld [vmem:[#allocation2 + $0x2cc] sm:$0xf]
    %v177 = vld [vmem:[#allocation2 + $0x2d0] sm:$0xff]
    %v178 = vld [vmem:[#allocation2 + $0x2d8] sm:$0xf]
    %v179 = vld [vmem:[#allocation2 + $0x2dc] sm:$0xff]
    %v180 = vld [vmem:[#allocation2 + $0x2e4] sm:$0xf]
    %v181 = vld [vmem:[#allocation2 + $0x2e8] sm:$0xff]
    %v182 = vld [vmem:[#allocation2 + $0x2f0] sm:$0xf]
    %v183 = vld [vmem:[#allocation2 + $0x2f4] sm:$0xff]
    %v184 = vld [vmem:[#allocation2 + $0x2fc] sm:$0xf]
    %v185 = vld [vmem:[#allocation2 + $0x300] sm:$0xff]
    %v186 = vld [vmem:[#allocation2 + $0x308] sm:$0xf]
    %v187 = vld [vmem:[#allocation2 + $0x30c] sm:$0xff]
    %v188 = vld [vmem:[#allocation2 + $0x314] sm:$0xf]
    %v189 = vld [vmem:[#allocation2 + $0x318] sm:$0xff]
    %v190 = vld [vmem:[#allocation2 + $0x320] sm:$0xf]
    %v191 = vld [vmem:[#allocation2 + $0x324] sm:$0xff]
    %v192 = vld [vmem:[#allocation2 + $0x32c] sm:$0xf]
    %v193 = vld [vmem:[#allocation2 + $0x330] sm:$0xff]
    %v194 = vld [vmem:[#allocation2 + $0x338] sm:$0xf]
    %v195 = vld [vmem:[#allocation2 + $0x33c] sm:$0xff]
    %v196 = vld [vmem:[#allocation2 + $0x344] sm:$0xf]
    %v197 = vld [vmem:[#allocation2 + $0x348] sm:$0xff]
    %v198 = vld [vmem:[#allocation2 + $0x350] sm:$0xf]
    %v199 = vld [vmem:[#allocation2 + $0x354] sm:$0xff]
    %v200 = vld [vmem:[#allocation2 + $0x35c] sm:$0xf]
    %v201 = vld [vmem:[#allocation2 + $0x360] sm:$0xff]
    %v202 = vld [vmem:[#allocation2 + $0x368] sm:$0xf]
    %v203 = vld [vmem:[#allocation2 + $0x36c] sm:$0xff]
    %v204 = vld [vmem:[#allocation2 + $0x374] sm:$0xf]
    %v205 = vld [vmem:[#allocation2 + $0x378] sm:$0xff]
    %v206 = vld [vmem:[#allocation2 + $0x380] sm:$0xf]
    %v207 = vld [vmem:[#allocation2 + $0x384] sm:$0xff]
    %v208 = vld [vmem:[#allocation2 + $0x38c] sm:$0xf]
    %v209 = vld [vmem:[#allocation2 + $0x390] sm:$0xff]
    %v210 = vld [vmem:[#allocation2 + $0x398] sm:$0xf]
    %v211 = vld [vmem:[#allocation2 + $0x39c] sm:$0xff]
    %v212 = vld [vmem:[#allocation2 + $0x3a4] sm:$0xf]
    %v213 = vld [vmem:[#allocation2 + $0x3a8] sm:$0xff]
    %v214 = vld [vmem:[#allocation2 + $0x3b0] sm:$0xf]
    %v215 = vld [vmem:[#allocation2 + $0x3b4] sm:$0xff]
    %v216 = vld [vmem:[#allocation2 + $0x3bc] sm:$0xf]
    %v217 = vld [vmem:[#allocation2 + $0x3c0] sm:$0xff]
    %v218 = vld [vmem:[#allocation2 + $0x3c8] sm:$0xf]
    %v219 = vld [vmem:[#allocation2 + $0x3cc] sm:$0xff]
    %v220 = vld [vmem:[#allocation2 + $0x3d4] sm:$0xf]
    %v221 = vld [vmem:[#allocation2 + $0x3d8] sm:$0xff]
    %v222 = vld [vmem:[#allocation2 + $0x3e0] sm:$0xf]
    %v223 = vld [vmem:[#allocation2 + $0x3e4] sm:$0xff]
    %v224 = vld [vmem:[#allocation2 + $0x3ec] sm:$0xf]
    %v225 = vld [vmem:[#allocation2 + $0x3f0] sm:$0xff]
    %v226 = vld [vmem:[#allocation2 + $0x3f8] sm:$0xf]
    %v227 = vld [vmem:[#allocation2 + $0x3fc] sm:$0xff]
    %v228 = vld [vmem:[#allocation2 + $0x404] sm:$0xf]
    %v229 = vld [vmem:[#allocation2 + $0x408] sm:$0xff]
    %v230 = vld [vmem:[#allocation2 + $0x410] sm:$0xf]
    %v231 = vld [vmem:[#allocation2 + $0x414] sm:$0xff]
    %v232 = vld [vmem:[#allocation2 + $0x41c] sm:$0xf]
    %v233 = vld [vmem:[#allocation2 + $0x420] sm:$0xff]
    %v234 = vld [vmem:[#allocation2 + $0x428] sm:$0xf]
    %v235 = vld [vmem:[#allocation2 + $0x42c] sm:$0xff]
    %v236 = vld [vmem:[#allocation2 + $0x434] sm:$0xf]
    %v237 = vld [vmem:[#allocation2 + $0x438] sm:$0xff]
    %v238 = vld [vmem:[#allocation2 + $0x440] sm:$0xf]
    %v239 = vld [vmem:[#allocation2 + $0x444] sm:$0xff]
    %v240 = vld [vmem:[#allocation2 + $0x44c] sm:$0xf]
    %v241 = vld [vmem:[#allocation2 + $0x450] sm:$0xff]
    %v242 = vld [vmem:[#allocation2 + $0x458] sm:$0xf]
    %v243 = vld [vmem:[#allocation2 + $0x45c] sm:$0xff]
    %v244 = vld [vmem:[#allocation2 + $0x464] sm:$0xf]
    %v245 = vld [vmem:[#allocation2 + $0x468] sm:$0xff]
    %v246 = vld [vmem:[#allocation2 + $0x470] sm:$0xf]
    %v247 = vld [vmem:[#allocation2 + $0x474] sm:$0xff]
    %v248 = vld [vmem:[#allocation2 + $0x47c] sm:$0xf]
    %v249 = vld [vmem:[#allocation2 + $0x480] sm:$0xff]
    %v250 = vld [vmem:[#allocation2 + $0x488] sm:$0xf]
    %v251 = vld [vmem:[#allocation2 + $0x48c] sm:$0xff]
    %v252 = vld [vmem:[#allocation2 + $0x494] sm:$0xf]
    %v253 = vld [vmem:[%s2] sm:$0x7]
    %v255 = vperm.slane %v253, 0
    %v256 = vperm.slane %v253, 1
    %v257 = vperm.slane %v253, 2
    %v457 = vunpack.c.l.b16 %v57
    %v458 = vunpack.c.h.b16 %v57
    %v459 = vunpack.c.l.b16 %v58
    %v460 = vunpack.c.l.b16 %v59
    %v461 = vunpack.c.h.b16 %v59
    %v462 = vunpack.c.l.b16 %v60
    %v463 = vunpack.c.l.b16 %v61
    %v464 = vunpack.c.h.b16 %v61
    %v465 = vunpack.c.l.b16 %v62
    %v466 = vunpack.c.l.b16 %v63
    %v467 = vunpack.c.h.b16 %v63
    %v468 = vunpack.c.l.b16 %v64
    %v469 = vunpack.c.l.b16 %v65
    %v470 = vunpack.c.h.b16 %v65
    %v471 = vunpack.c.l.b16 %v66
    %v472 = vunpack.c.l.b16 %v67
    %v473 = vunpack.c.h.b16 %v67
    %v474 = vunpack.c.l.b16 %v68
    %v475 = vunpack.c.l.b16 %v69
    %v476 = vunpack.c.h.b16 %v69
    %v477 = vunpack.c.l.b16 %v70
    %v478 = vunpack.c.l.b16 %v71
    %v479 = vunpack.c.h.b16 %v71
    %v480 = vunpack.c.l.b16 %v72
    %v481 = vunpack.c.l.b16 %v73
    %v482 = vunpack.c.h.b16 %v73
    %v483 = vunpack.c.l.b16 %v74
    %v484 = vunpack.c.l.b16 %v75
    %v485 = vunpack.c.h.b16 %v75
    %v486 = vunpack.c.l.b16 %v76
    %v487 = vunpack.c.l.b16 %v77
    %v488 = vunpack.c.h.b16 %v77
    %v489 = vunpack.c.l.b16 %v78
    %v490 = vunpack.c.l.b16 %v79
    %v491 = vunpack.c.h.b16 %v79
    %v492 = vunpack.c.l.b16 %v80
    %v493 = vunpack.c.l.b16 %v81
    %v494 = vunpack.c.h.b16 %v81
    %v495 = vunpack.c.l.b16 %v82
    %v496 = vunpack.c.l.b16 %v83
    %v497 = vunpack.c.h.b16 %v83
    %v498 = vunpack.c.l.b16 %v84
    %v499 = vunpack.c.l.b16 %v85
    %v500 = vunpack.c.h.b16 %v85
    %v501 = vunpack.c.l.b16 %v86
    %v502 = vunpack.c.l.b16 %v87
    %v503 = vunpack.c.h.b16 %v87
    %v504 = vunpack.c.l.b16 %v88
    %v505 = vunpack.c.l.b16 %v89
    %v506 = vunpack.c.h.b16 %v89
    %v507 = vunpack.c.l.b16 %v90
    %v508 = vunpack.c.l.b16 %v91
    %v509 = vunpack.c.h.b16 %v91
    %v510 = vunpack.c.l.b16 %v92
    %v511 = vunpack.c.l.b16 %v93
    %v512 = vunpack.c.h.b16 %v93
    %v513 = vunpack.c.l.b16 %v94
    %v514 = vunpack.c.l.b16 %v95
    %v515 = vunpack.c.h.b16 %v95
    %v516 = vunpack.c.l.b16 %v96
    %v517 = vunpack.c.l.b16 %v97
    %v518 = vunpack.c.h.b16 %v97
    %v519 = vunpack.c.l.b16 %v98
    %v520 = vunpack.c.l.b16 %v99
    %v521 = vunpack.c.h.b16 %v99
    %v522 = vunpack.c.l.b16 %v100
    %v523 = vunpack.c.l.b16 %v101
    %v524 = vunpack.c.h.b16 %v101
    %v525 = vunpack.c.l.b16 %v102
    %v526 = vunpack.c.l.b16 %v103
    %v527 = vunpack.c.h.b16 %v103
    %v528 = vunpack.c.l.b16 %v104
    %v529 = vunpack.c.l.b16 %v105
    %v530 = vunpack.c.h.b16 %v105
    %v531 = vunpack.c.l.b16 %v106
    %v532 = vunpack.c.l.b16 %v107
    %v533 = vunpack.c.h.b16 %v107
    %v534 = vunpack.c.l.b16 %v108
    %v535 = vunpack.c.l.b16 %v109
    %v536 = vunpack.c.h.b16 %v109
    %v537 = vunpack.c.l.b16 %v110
    %v538 = vunpack.c.l.b16 %v111
    %v539 = vunpack.c.h.b16 %v111
    %v540 = vunpack.c.l.b16 %v112
    %v541 = vunpack.c.l.b16 %v113
    %v542 = vunpack.c.h.b16 %v113
    %v543 = vunpack.c.l.b16 %v114
    %v544 = vunpack.c.l.b16 %v115
    %v545 = vunpack.c.h.b16 %v115
    %v546 = vunpack.c.l.b16 %v116
    %v547 = vunpack.c.l.b16 %v117
    %v548 = vunpack.c.h.b16 %v117
    %v549 = vunpack.c.l.b16 %v118
    %v550 = vunpack.c.l.b16 %v119
    %v551 = vunpack.c.h.b16 %v119
    %v552 = vunpack.c.l.b16 %v120
    %v553 = vunpack.c.l.b16 %v121
    %v554 = vunpack.c.h.b16 %v121
    %v555 = vunpack.c.l.b16 %v122
    %v556 = vunpack.c.l.b16 %v123
    %v557 = vunpack.c.h.b16 %v123
    %v558 = vunpack.c.l.b16 %v124
    %v559 = vunpack.c.l.b16 %v125
    %v560 = vunpack.c.h.b16 %v125
    %v561 = vunpack.c.l.b16 %v126
    %v562 = vunpack.c.l.b16 %v127
    %v563 = vunpack.c.h.b16 %v127
    %v564 = vunpack.c.l.b16 %v128
    %v565 = vunpack.c.l.b16 %v129
    %v566 = vunpack.c.h.b16 %v129
    %v567 = vunpack.c.l.b16 %v130
    %v568 = vunpack.c.l.b16 %v131
    %v569 = vunpack.c.h.b16 %v131
    %v570 = vunpack.c.l.b16 %v132
    %v571 = vunpack.c.l.b16 %v133
    %v572 = vunpack.c.h.b16 %v133
    %v573 = vunpack.c.l.b16 %v134
    %v574 = vunpack.c.l.b16 %v135
    %v575 = vunpack.c.h.b16 %v135
    %v576 = vunpack.c.l.b16 %v136
    %v577 = vunpack.c.l.b16 %v137
    %v578 = vunpack.c.h.b16 %v137
    %v579 = vunpack.c.l.b16 %v138
    %v580 = vunpack.c.l.b16 %v139
    %v581 = vunpack.c.h.b16 %v139
    %v582 = vunpack.c.l.b16 %v140
    %v583 = vunpack.c.l.b16 %v141
    %v584 = vunpack.c.h.b16 %v141
    %v585 = vunpack.c.l.b16 %v142
    %v586 = vunpack.c.l.b16 %v143
    %v587 = vunpack.c.h.b16 %v143
    %v588 = vunpack.c.l.b16 %v144
    %v589 = vunpack.c.l.b16 %v145
    %v590 = vunpack.c.h.b16 %v145
    %v591 = vunpack.c.l.b16 %v146
    %v592 = vunpack.c.l.b16 %v147
    %v593 = vunpack.c.h.b16 %v147
    %v594 = vunpack.c.l.b16 %v148
    %v595 = vunpack.c.l.b16 %v149
    %v596 = vunpack.c.h.b16 %v149
    %v597 = vunpack.c.l.b16 %v150
    %v598 = vunpack.c.l.b16 %v151
    %v599 = vunpack.c.h.b16 %v151
    %v600 = vunpack.c.l.b16 %v152
    %v601 = vunpack.c.l.b16 %v153
    %v602 = vunpack.c.h.b16 %v153
    %v603 = vunpack.c.l.b16 %v154
    %v604 = vunpack.c.l.b16 %v155
    %v605 = vunpack.c.h.b16 %v155
    %v606 = vunpack.c.l.b16 %v156
    %v607 = vunpack.c.l.b16 %v157
    %v608 = vunpack.c.h.b16 %v157
    %v609 = vunpack.c.l.b16 %v158
    %v610 = vunpack.c.l.b16 %v159
    %v611 = vunpack.c.h.b16 %v159
    %v612 = vunpack.c.l.b16 %v160
    %v613 = vunpack.c.l.b16 %v161
    %v614 = vunpack.c.h.b16 %v161
    %v615 = vunpack.c.l.b16 %v162
    %v616 = vunpack.c.l.b16 %v163
    %v617 = vunpack.c.h.b16 %v163
    %v618 = vunpack.c.l.b16 %v164
    %v619 = vunpack.c.l.b16 %v165
    %v620 = vunpack.c.h.b16 %v165
    %v621 = vunpack.c.l.b16 %v166
    %v622 = vunpack.c.l.b16 %v167
    %v623 = vunpack.c.h.b16 %v167
    %v624 = vunpack.c.l.b16 %v168
    %v625 = vunpack.c.l.b16 %v169
    %v626 = vunpack.c.h.b16 %v169
    %v627 = vunpack.c.l.b16 %v170
    %v628 = vunpack.c.l.b16 %v171
    %v629 = vunpack.c.h.b16 %v171
    %v630 = vunpack.c.l.b16 %v172
    %v631 = vunpack.c.l.b16 %v173
    %v632 = vunpack.c.h.b16 %v173
    %v633 = vunpack.c.l.b16 %v174
    %v634 = vunpack.c.l.b16 %v175
    %v635 = vunpack.c.h.b16 %v175
    %v636 = vunpack.c.l.b16 %v176
    %v637 = vunpack.c.l.b16 %v177
    %v638 = vunpack.c.h.b16 %v177
    %v639 = vunpack.c.l.b16 %v178
    %v640 = vunpack.c.l.b16 %v179
    %v641 = vunpack.c.h.b16 %v179
    %v642 = vunpack.c.l.b16 %v180
    %v643 = vunpack.c.l.b16 %v181
    %v644 = vunpack.c.h.b16 %v181
    %v645 = vunpack.c.l.b16 %v182
    %v646 = vunpack.c.l.b16 %v183
    %v647 = vunpack.c.h.b16 %v183
    %v648 = vunpack.c.l.b16 %v184
    %v649 = vunpack.c.l.b16 %v185
    %v650 = vunpack.c.h.b16 %v185
    %v651 = vunpack.c.l.b16 %v186
    %v652 = vunpack.c.l.b16 %v187
    %v653 = vunpack.c.h.b16 %v187
    %v654 = vunpack.c.l.b16 %v188
    %v655 = vunpack.c.l.b16 %v189
    %v656 = vunpack.c.h.b16 %v189
    %v657 = vunpack.c.l.b16 %v190
    %v658 = vunpack.c.l.b16 %v191
    %v659 = vunpack.c.h.b16 %v191
    %v660 = vunpack.c.l.b16 %v192
    %v661 = vunpack.c.l.b16 %v193
    %v662 = vunpack.c.h.b16 %v193
    %v663 = vunpack.c.l.b16 %v194
    %v664 = vunpack.c.l.b16 %v195
    %v665 = vunpack.c.h.b16 %v195
    %v666 = vunpack.c.l.b16 %v196
    %v667 = vunpack.c.l.b16 %v197
    %v668 = vunpack.c.h.b16 %v197
    %v669 = vunpack.c.l.b16 %v198
    %v670 = vunpack.c.l.b16 %v199
    %v671 = vunpack.c.h.b16 %v199
    %v672 = vunpack.c.l.b16 %v200
    %v673 = vunpack.c.l.b16 %v201
    %v674 = vunpack.c.h.b16 %v201
    %v675 = vunpack.c.l.b16 %v202
    %v676 = vunpack.c.l.b16 %v203
    %v677 = vunpack.c.h.b16 %v203
    %v678 = vunpack.c.l.b16 %v204
    %v679 = vunpack.c.l.b16 %v205
    %v680 = vunpack.c.h.b16 %v205
    %v681 = vunpack.c.l.b16 %v206
    %v682 = vunpack.c.l.b16 %v207
    %v683 = vunpack.c.h.b16 %v207
    %v684 = vunpack.c.l.b16 %v208
    %v685 = vunpack.c.l.b16 %v209
    %v686 = vunpack.c.h.b16 %v209
    %v687 = vunpack.c.l.b16 %v210
    %v688 = vunpack.c.l.b16 %v211
    %v689 = vunpack.c.h.b16 %v211
    %v690 = vunpack.c.l.b16 %v212
    %v691 = vunpack.c.l.b16 %v213
    %v692 = vunpack.c.h.b16 %v213
    %v693 = vunpack.c.l.b16 %v214
    %v694 = vunpack.c.l.b16 %v215
    %v695 = vunpack.c.h.b16 %v215
    %v696 = vunpack.c.l.b16 %v216
    %v697 = vunpack.c.l.b16 %v217
    %v698 = vunpack.c.h.b16 %v217
    %v699 = vunpack.c.l.b16 %v218
    %v700 = vunpack.c.l.b16 %v219
    %v701 = vunpack.c.h.b16 %v219
    %v702 = vunpack.c.l.b16 %v220
    %v703 = vunpack.c.l.b16 %v221
    %v704 = vunpack.c.h.b16 %v221
    %v705 = vunpack.c.l.b16 %v222
    %v706 = vunpack.c.l.b16 %v223
    %v707 = vunpack.c.h.b16 %v223
    %v708 = vunpack.c.l.b16 %v224
    %v709 = vunpack.c.l.b16 %v225
    %v710 = vunpack.c.h.b16 %v225
    %v711 = vunpack.c.l.b16 %v226
    %v712 = vunpack.c.l.b16 %v227
    %v713 = vunpack.c.h.b16 %v227
    %v714 = vunpack.c.l.b16 %v228
    %v715 = vunpack.c.l.b16 %v229
    %v716 = vunpack.c.h.b16 %v229
    %v717 = vunpack.c.l.b16 %v230
    %v718 = vunpack.c.l.b16 %v231
    %v719 = vunpack.c.h.b16 %v231
    %v720 = vunpack.c.l.b16 %v232
    %v721 = vunpack.c.l.b16 %v233
    %v722 = vunpack.c.h.b16 %v233
    %v723 = vunpack.c.l.b16 %v234
    %v724 = vunpack.c.l.b16 %v235
    %v725 = vunpack.c.h.b16 %v235
    %v726 = vunpack.c.l.b16 %v236
    %v727 = vunpack.c.l.b16 %v237
    %v728 = vunpack.c.h.b16 %v237
    %v729 = vunpack.c.l.b16 %v238
    %v730 = vunpack.c.l.b16 %v239
    %v731 = vunpack.c.h.b16 %v239
    %v732 = vunpack.c.l.b16 %v240
    %v733 = vunpack.c.l.b16 %v241
    %v734 = vunpack.c.h.b16 %v241
    %v735 = vunpack.c.l.b16 %v242
    %v736 = vunpack.c.l.b16 %v243
    %v737 = vunpack.c.h.b16 %v243
    %v738 = vunpack.c.l.b16 %v244
    %v739 = vunpack.c.l.b16 %v245
    %v740 = vunpack.c.h.b16 %v245
    %v741 = vunpack.c.l.b16 %v246
    %v742 = vunpack.c.l.b16 %v247
    %v743 = vunpack.c.h.b16 %v247
    %v744 = vunpack.c.l.b16 %v248
    %v745 = vunpack.c.l.b16 %v249
    %v746 = vunpack.c.h.b16 %v249
    %v747 = vunpack.c.l.b16 %v250
    %v748 = vunpack.c.l.b16 %v251
    %v749 = vunpack.c.h.b16 %v251
    %v750 = vunpack.c.l.b16 %v252
    %v751 = vpack.c.b16 %v460, %v457
    %v752 = vpack.c.b16 %v461, %v458
    %v753 = vpack.c.b16 %v462, %v459
    %v754 = vpack.c.b16 %v466, %v463
    %v755 = vpack.c.b16 %v467, %v464
    %v756 = vpack.c.b16 %v468, %v465
    %v757 = vpack.c.b16 %v472, %v469
    %v758 = vpack.c.b16 %v473, %v470
    %v759 = vpack.c.b16 %v474, %v471
    %v760 = vpack.c.b16 %v478, %v475
    %v761 = vpack.c.b16 %v479, %v476
    %v762 = vpack.c.b16 %v480, %v477
    %v763 = vpack.c.b16 %v484, %v481
    %v764 = vpack.c.b16 %v485, %v482
    %v765 = vpack.c.b16 %v486, %v483
    %v766 = vpack.c.b16 %v490, %v487
    %v767 = vpack.c.b16 %v491, %v488
    %v768 = vpack.c.b16 %v492, %v489
    %v769 = vpack.c.b16 %v496, %v493
    %v770 = vpack.c.b16 %v497, %v494
    %v771 = vpack.c.b16 %v498, %v495
    %v772 = vpack.c.b16 %v502, %v499
    %v773 = vpack.c.b16 %v503, %v500
    %v774 = vpack.c.b16 %v504, %v501
    %v775 = vpack.c.b16 %v508, %v505
    %v776 = vpack.c.b16 %v509, %v506
    %v777 = vpack.c.b16 %v510, %v507
    %v778 = vpack.c.b16 %v514, %v511
    %v779 = vpack.c.b16 %v515, %v512
    %v780 = vpack.c.b16 %v516, %v513
    %v781 = vpack.c.b16 %v520, %v517
    %v782 = vpack.c.b16 %v521, %v518
    %v783 = vpack.c.b16 %v522, %v519
    %v784 = vpack.c.b16 %v526, %v523
    %v785 = vpack.c.b16 %v527, %v524
    %v786 = vpack.c.b16 %v528, %v525
    %v787 = vpack.c.b16 %v532, %v529
    %v788 = vpack.c.b16 %v533, %v530
    %v789 = vpack.c.b16 %v534, %v531
    %v790 = vpack.c.b16 %v538, %v535
    %v791 = vpack.c.b16 %v539, %v536
    %v792 = vpack.c.b16 %v540, %v537
    %v793 = vpack.c.b16 %v544, %v541
    %v794 = vpack.c.b16 %v545, %v542
    %v795 = vpack.c.b16 %v546, %v543
    %v796 = vpack.c.b16 %v550, %v547
    %v797 = vpack.c.b16 %v551, %v548
    %v798 = vpack.c.b16 %v552, %v549
    %v799 = vpack.c.b16 %v556, %v553
    %v800 = vpack.c.b16 %v557, %v554
    %v801 = vpack.c.b16 %v558, %v555
    %v802 = vpack.c.b16 %v562, %v559
    %v803 = vpack.c.b16 %v563, %v560
    %v804 = vpack.c.b16 %v564, %v561
    %v805 = vpack.c.b16 %v568, %v565
    %v806 = vpack.c.b16 %v569, %v566
    %v807 = vpack.c.b16 %v570, %v567
    %v808 = vpack.c.b16 %v574, %v571
    %v809 = vpack.c.b16 %v575, %v572
    %v810 = vpack.c.b16 %v576, %v573
    %v811 = vpack.c.b16 %v580, %v577
    %v812 = vpack.c.b16 %v581, %v578
    %v813 = vpack.c.b16 %v582, %v579
    %v814 = vpack.c.b16 %v586, %v583
    %v815 = vpack.c.b16 %v587, %v584
    %v816 = vpack.c.b16 %v588, %v585
    %v817 = vpack.c.b16 %v592, %v589
    %v818 = vpack.c.b16 %v593, %v590
    %v819 = vpack.c.b16 %v594, %v591
    %v820 = vpack.c.b16 %v598, %v595
    %v821 = vpack.c.b16 %v599, %v596
    %v822 = vpack.c.b16 %v600, %v597
    %v823 = vpack.c.b16 %v604, %v601
    %v824 = vpack.c.b16 %v605, %v602
    %v825 = vpack.c.b16 %v606, %v603
    %v826 = vpack.c.b16 %v610, %v607
    %v827 = vpack.c.b16 %v611, %v608
    %v828 = vpack.c.b16 %v612, %v609
    %v829 = vpack.c.b16 %v616, %v613
    %v830 = vpack.c.b16 %v617, %v614
    %v831 = vpack.c.b16 %v618, %v615
    %v832 = vpack.c.b16 %v622, %v619
    %v833 = vpack.c.b16 %v623, %v620
    %v834 = vpack.c.b16 %v624, %v621
    %v835 = vpack.c.b16 %v628, %v625
    %v836 = vpack.c.b16 %v629, %v626
    %v837 = vpack.c.b16 %v630, %v627
    %v838 = vpack.c.b16 %v634, %v631
    %v839 = vpack.c.b16 %v635, %v632
    %v840 = vpack.c.b16 %v636, %v633
    %v841 = vpack.c.b16 %v640, %v637
    %v842 = vpack.c.b16 %v641, %v638
    %v843 = vpack.c.b16 %v642, %v639
    %v844 = vpack.c.b16 %v646, %v643
    %v845 = vpack.c.b16 %v647, %v644
    %v846 = vpack.c.b16 %v648, %v645
    %v847 = vpack.c.b16 %v652, %v649
    %v848 = vpack.c.b16 %v653, %v650
    %v849 = vpack.c.b16 %v654, %v651
    %v850 = vpack.c.b16 %v658, %v655
    %v851 = vpack.c.b16 %v659, %v656
    %v852 = vpack.c.b16 %v660, %v657
    %v853 = vpack.c.b16 %v664, %v661
    %v854 = vpack.c.b16 %v665, %v662
    %v855 = vpack.c.b16 %v666, %v663
    %v856 = vpack.c.b16 %v670, %v667
    %v857 = vpack.c.b16 %v671, %v668
    %v858 = vpack.c.b16 %v672, %v669
    %v859 = vpack.c.b16 %v676, %v673
    %v860 = vpack.c.b16 %v677, %v674
    %v861 = vpack.c.b16 %v678, %v675
    %v862 = vpack.c.b16 %v682, %v679
    %v863 = vpack.c.b16 %v683, %v680
    %v864 = vpack.c.b16 %v684, %v681
    %v865 = vpack.c.b16 %v688, %v685
    %v866 = vpack.c.b16 %v689, %v686
    %v867 = vpack.c.b16 %v690, %v687
    %v868 = vpack.c.b16 %v694, %v691
    %v869 = vpack.c.b16 %v695, %v692
    %v870 = vpack.c.b16 %v696, %v693
    %v871 = vpack.c.b16 %v700, %v697
    %v872 = vpack.c.b16 %v701, %v698
    %v873 = vpack.c.b16 %v702, %v699
    %v874 = vpack.c.b16 %v706, %v703
    %v875 = vpack.c.b16 %v707, %v704
    %v876 = vpack.c.b16 %v708, %v705
    %v877 = vpack.c.b16 %v712, %v709
    %v878 = vpack.c.b16 %v713, %v710
    %v879 = vpack.c.b16 %v714, %v711
    %v880 = vpack.c.b16 %v718, %v715
    %v881 = vpack.c.b16 %v719, %v716
    %v882 = vpack.c.b16 %v720, %v717
    %v883 = vpack.c.b16 %v724, %v721
    %v884 = vpack.c.b16 %v725, %v722
    %v885 = vpack.c.b16 %v726, %v723
    %v886 = vpack.c.b16 %v730, %v727
    %v887 = vpack.c.b16 %v731, %v728
    %v888 = vpack.c.b16 %v732, %v729
    %v889 = vpack.c.b16 %v736, %v733
    %v890 = vpack.c.b16 %v737, %v734
    %v891 = vpack.c.b16 %v738, %v735
    %v892 = vpack.c.b16 %v742, %v739
    %v893 = vpack.c.b16 %v743, %v740
    %v894 = vpack.c.b16 %v744, %v741
    %v895 = vpack.c.b16 %v748, %v745
    %v896 = vpack.c.b16 %v749, %v746
    %v897 = vpack.c.b16 %v750, %v747
    %vm1045 = vcmask 130048
    %v1047 = vsel %vm1045, %v56, 0
    %1049 = vmatpush.bf16.msra.mxu0 %v772
    %1050 = vmatpush.bf16.msra.mxu0 %v769
    %1051 = vmatpush.bf16.msra.mxu0 %v766
    %1052 = vmatpush.bf16.msra.mxu0 %v763
    %1053 = vmatpush.bf16.msra.mxu0 %v760
    %1054 = vmatpush.bf16.msra.mxu0 %v757
    %1055 = vmatpush.bf16.msra.mxu0 %v754
    %1056 = vmatpush.bf16.msra.mxu0 %v751
    %1057 = vmatmul.bf16.gmra.mxu0 %v50
    %v1058 = vpop.f32.mrf.mxu0
    %v1059 = vadd.f32 %v255, %v1058
    %v1060 = vpop.f32.mrf.mxu0
    %1061 = vdwg.mxu0
    %1062 = vmatpush.bf16.msra.mxu0 %v796
    %1063 = vmatpush.bf16.msra.mxu0 %v793
    %1064 = vmatpush.bf16.msra.mxu0 %v790
    %1065 = vmatpush.bf16.msra.mxu0 %v787
    %1066 = vmatpush.bf16.msra.mxu0 %v784
    %1067 = vmatpush.bf16.msra.mxu0 %v781
    %1068 = vmatpush.bf16.msra.mxu0 %v778
    %1069 = vmatpush.bf16.msra.mxu0 %v775
    %1070 = vmatmul.bf16.gmra.mxu0 %v51
    %v1071 = vpop.f32.mrf.mxu0
    %v1072 = vadd.f32 %v1059, %v1071
    %v1073 = vpop.f32.mrf.mxu0
    %1074 = vdwg.mxu0
    %1075 = vmatpush.bf16.msra.mxu0 %v820
    %1076 = vmatpush.bf16.msra.mxu0 %v817
    %1077 = vmatpush.bf16.msra.mxu0 %v814
    %1078 = vmatpush.bf16.msra.mxu0 %v811
    %1079 = vmatpush.bf16.msra.mxu0 %v808
    %1080 = vmatpush.bf16.msra.mxu0 %v805
    %1081 = vmatpush.bf16.msra.mxu0 %v802
    %1082 = vmatpush.bf16.msra.mxu0 %v799
    %1083 = vmatmul.bf16.gmra.mxu0 %v52
    %v1084 = vpop.f32.mrf.mxu0
    %v1085 = vadd.f32 %v1072, %v1084
    %v1086 = vpop.f32.mrf.mxu0
    %1087 = vdwg.mxu0
    %1088 = vmatpush.bf16.msra.mxu0 %v844
    %1089 = vmatpush.bf16.msra.mxu0 %v841
    %1090 = vmatpush.bf16.msra.mxu0 %v838
    %1091 = vmatpush.bf16.msra.mxu0 %v835
    %1092 = vmatpush.bf16.msra.mxu0 %v832
    %1093 = vmatpush.bf16.msra.mxu0 %v829
    %1094 = vmatpush.bf16.msra.mxu0 %v826
    %1095 = vmatpush.bf16.msra.mxu0 %v823
    %1096 = vmatmul.bf16.gmra.mxu0 %v53
    %v1097 = vpop.f32.mrf.mxu0
    %v1098 = vadd.f32 %v1085, %v1097
    %v1099 = vpop.f32.mrf.mxu0
    %1100 = vdwg.mxu0
    %1101 = vmatpush.bf16.msra.mxu0 %v868
    %1102 = vmatpush.bf16.msra.mxu0 %v865
    %1103 = vmatpush.bf16.msra.mxu0 %v862
    %1104 = vmatpush.bf16.msra.mxu0 %v859
    %1105 = vmatpush.bf16.msra.mxu0 %v856
    %1106 = vmatpush.bf16.msra.mxu0 %v853
    %1107 = vmatpush.bf16.msra.mxu0 %v850
    %1108 = vmatpush.bf16.msra.mxu0 %v847
    %1109 = vmatmul.bf16.gmra.mxu0 %v54
    %v1110 = vpop.f32.mrf.mxu0
    %v1111 = vadd.f32 %v1098, %v1110
    %v1112 = vpop.f32.mrf.mxu0
    %1113 = vdwg.mxu0
    %1114 = vmatpush.bf16.msra.mxu0 %v892
    %1115 = vmatpush.bf16.msra.mxu0 %v889
    %1116 = vmatpush.bf16.msra.mxu0 %v886
    %1117 = vmatpush.bf16.msra.mxu0 %v883
    %1118 = vmatpush.bf16.msra.mxu0 %v880
    %1119 = vmatpush.bf16.msra.mxu0 %v877
    %1120 = vmatpush.bf16.msra.mxu0 %v874
    %1121 = vmatpush.bf16.msra.mxu0 %v871
    %1122 = vmatmul.bf16.gmra.mxu0 %v55
    %v1123 = vpop.f32.mrf.mxu0
    %v1124 = vadd.f32 %v1111, %v1123
    %v1125 = vpop.f32.mrf.mxu0
    %1126 = vdwg.mxu0
    %1127 = vmatpush.bf16.msra.mxu0 0
    %1128 = vmatpush.bf16.msra.mxu0 0
    %1129 = vmatpush.bf16.msra.mxu0 0
    %1130 = vmatpush.bf16.msra.mxu0 0
    %1131 = vmatpush.bf16.msra.mxu0 0
    %1132 = vmatpush.bf16.msra.mxu0 0
    %1133 = vmatpush.bf16.msra.mxu0 0
    %1134 = vmatpush.bf16.msra.mxu0 %v895
    %1135 = vmatmul.bf16.gmra.mxu0 %v1047
    %v1136 = vpop.f32.mrf.mxu0
    %v1137 = vadd.f32 %v1124, %v1136
    %v1138 = vpop.f32.mrf.mxu0
    %1139 = vdwg.mxu0
    %1140 = vmatpush.bf16.msra.mxu0 %v773
    %1141 = vmatpush.bf16.msra.mxu0 %v770
    %1142 = vmatpush.bf16.msra.mxu0 %v767
    %1143 = vmatpush.bf16.msra.mxu0 %v764
    %1144 = vmatpush.bf16.msra.mxu0 %v761
    %1145 = vmatpush.bf16.msra.mxu0 %v758
    %1146 = vmatpush.bf16.msra.mxu0 %v755
    %1147 = vmatpush.bf16.msra.mxu0 %v752
    %1148 = vmatmul.bf16.gmra.mxu0 %v50
    %v1149 = vpop.f32.mrf.mxu0
    %v1150 = vadd.f32 %v256, %v1149
    %v1151 = vpop.f32.mrf.mxu0
    %1152 = vdwg.mxu0
    %1153 = vmatpush.bf16.msra.mxu0 %v797
    %1154 = vmatpush.bf16.msra.mxu0 %v794
    %1155 = vmatpush.bf16.msra.mxu0 %v791
    %1156 = vmatpush.bf16.msra.mxu0 %v788
    %1157 = vmatpush.bf16.msra.mxu0 %v785
    %1158 = vmatpush.bf16.msra.mxu0 %v782
    %1159 = vmatpush.bf16.msra.mxu0 %v779
    %1160 = vmatpush.bf16.msra.mxu0 %v776
    %1161 = vmatmul.bf16.gmra.mxu0 %v51
    %v1162 = vpop.f32.mrf.mxu0
    %v1163 = vadd.f32 %v1150, %v1162
    %v1164 = vpop.f32.mrf.mxu0
    %1165 = vdwg.mxu0
    %1166 = vmatpush.bf16.msra.mxu0 %v821
    %1167 = vmatpush.bf16.msra.mxu0 %v818
    %1168 = vmatpush.bf16.msra.mxu0 %v815
    %1169 = vmatpush.bf16.msra.mxu0 %v812
    %1170 = vmatpush.bf16.msra.mxu0 %v809
    %1171 = vmatpush.bf16.msra.mxu0 %v806
    %1172 = vmatpush.bf16.msra.mxu0 %v803
    %1173 = vmatpush.bf16.msra.mxu0 %v800
    %1174 = vmatmul.bf16.gmra.mxu0 %v52
    %v1175 = vpop.f32.mrf.mxu0
    %v1176 = vadd.f32 %v1163, %v1175
    %v1177 = vpop.f32.mrf.mxu0
    %1178 = vdwg.mxu0
    %1179 = vmatpush.bf16.msra.mxu0 %v845
    %1180 = vmatpush.bf16.msra.mxu0 %v842
    %1181 = vmatpush.bf16.msra.mxu0 %v839
    %1182 = vmatpush.bf16.msra.mxu0 %v836
    %1183 = vmatpush.bf16.msra.mxu0 %v833
    %1184 = vmatpush.bf16.msra.mxu0 %v830
    %1185 = vmatpush.bf16.msra.mxu0 %v827
    %1186 = vmatpush.bf16.msra.mxu0 %v824
    %1187 = vmatmul.bf16.gmra.mxu0 %v53
    %v1188 = vpop.f32.mrf.mxu0
    %v1189 = vadd.f32 %v1176, %v1188
    %v1190 = vpop.f32.mrf.mxu0
    %1191 = vdwg.mxu0
    %1192 = vmatpush.bf16.msra.mxu0 %v869
    %1193 = vmatpush.bf16.msra.mxu0 %v866
    %1194 = vmatpush.bf16.msra.mxu0 %v863
    %1195 = vmatpush.bf16.msra.mxu0 %v860
    %1196 = vmatpush.bf16.msra.mxu0 %v857
    %1197 = vmatpush.bf16.msra.mxu0 %v854
    %1198 = vmatpush.bf16.msra.mxu0 %v851
    %1199 = vmatpush.bf16.msra.mxu0 %v848
    %1200 = vmatmul.bf16.gmra.mxu0 %v54
    %v1201 = vpop.f32.mrf.mxu0
    %v1202 = vadd.f32 %v1189, %v1201
    %v1203 = vpop.f32.mrf.mxu0
    %1204 = vdwg.mxu0
    %1205 = vmatpush.bf16.msra.mxu0 %v893
    %1206 = vmatpush.bf16.msra.mxu0 %v890
    %1207 = vmatpush.bf16.msra.mxu0 %v887
    %1208 = vmatpush.bf16.msra.mxu0 %v884
    %1209 = vmatpush.bf16.msra.mxu0 %v881
    %1210 = vmatpush.bf16.msra.mxu0 %v878
    %1211 = vmatpush.bf16.msra.mxu0 %v875
    %1212 = vmatpush.bf16.msra.mxu0 %v872
    %1213 = vmatmul.bf16.gmra.mxu0 %v55
    %v1214 = vpop.f32.mrf.mxu0
    %v1215 = vadd.f32 %v1202, %v1214
    %v1216 = vpop.f32.mrf.mxu0
    %1217 = vdwg.mxu0
    %1218 = vmatpush.bf16.msra.mxu0 0
    %1219 = vmatpush.bf16.msra.mxu0 0
    %1220 = vmatpush.bf16.msra.mxu0 0
    %1221 = vmatpush.bf16.msra.mxu0 0
    %1222 = vmatpush.bf16.msra.mxu0 0
    %1223 = vmatpush.bf16.msra.mxu0 0
    %1224 = vmatpush.bf16.msra.mxu0 0
    %1225 = vmatpush.bf16.msra.mxu0 %v896
    %1226 = vmatmul.bf16.gmra.mxu0 %v1047
    %v1227 = vpop.f32.mrf.mxu0
    %v1228 = vadd.f32 %v1215, %v1227
    %v1229 = vpop.f32.mrf.mxu0
    %1230 = vdwg.mxu0
    %1231 = vmatpush.bf16.msra.mxu0 %v774
    %1232 = vmatpush.bf16.msra.mxu0 %v771
    %1233 = vmatpush.bf16.msra.mxu0 %v768
    %1234 = vmatpush.bf16.msra.mxu0 %v765
    %1235 = vmatpush.bf16.msra.mxu0 %v762
    %1236 = vmatpush.bf16.msra.mxu0 %v759
    %1237 = vmatpush.bf16.msra.mxu0 %v756
    %1238 = vmatpush.bf16.msra.mxu0 %v753
    %1239 = vmatmul.bf16.gmra.mxu0 %v50
    %v1240 = vpop.f32.mrf.mxu0
    %v1241 = vadd.f32 %v257, %v1240
    %v1242 = vpop.f32.mrf.mxu0
    %1243 = vdwg.mxu0
    %1244 = vmatpush.bf16.msra.mxu0 %v798
    %1245 = vmatpush.bf16.msra.mxu0 %v795
    %1246 = vmatpush.bf16.msra.mxu0 %v792
    %1247 = vmatpush.bf16.msra.mxu0 %v789
    %1248 = vmatpush.bf16.msra.mxu0 %v786
    %1249 = vmatpush.bf16.msra.mxu0 %v783
    %1250 = vmatpush.bf16.msra.mxu0 %v780
    %1251 = vmatpush.bf16.msra.mxu0 %v777
    %1252 = vmatmul.bf16.gmra.mxu0 %v51
    %v1253 = vpop.f32.mrf.mxu0
    %v1254 = vadd.f32 %v1241, %v1253
    %v1255 = vpop.f32.mrf.mxu0
    %1256 = vdwg.mxu0
    %1257 = vmatpush.bf16.msra.mxu0 %v822
    %1258 = vmatpush.bf16.msra.mxu0 %v819
    %1259 = vmatpush.bf16.msra.mxu0 %v816
    %1260 = vmatpush.bf16.msra.mxu0 %v813
    %1261 = vmatpush.bf16.msra.mxu0 %v810
    %1262 = vmatpush.bf16.msra.mxu0 %v807
    %1263 = vmatpush.bf16.msra.mxu0 %v804
    %1264 = vmatpush.bf16.msra.mxu0 %v801
    %1265 = vmatmul.bf16.gmra.mxu0 %v52
    %v1266 = vpop.f32.mrf.mxu0
    %v1267 = vadd.f32 %v1254, %v1266
    %v1268 = vpop.f32.mrf.mxu0
    %1269 = vdwg.mxu0
    %1270 = vmatpush.bf16.msra.mxu0 %v846
    %1271 = vmatpush.bf16.msra.mxu0 %v843
    %1272 = vmatpush.bf16.msra.mxu0 %v840
    %1273 = vmatpush.bf16.msra.mxu0 %v837
    %1274 = vmatpush.bf16.msra.mxu0 %v834
    %1275 = vmatpush.bf16.msra.mxu0 %v831
    %1276 = vmatpush.bf16.msra.mxu0 %v828
    %1277 = vmatpush.bf16.msra.mxu0 %v825
    %1278 = vmatmul.bf16.gmra.mxu0 %v53
    %v1279 = vpop.f32.mrf.mxu0
    %v1280 = vadd.f32 %v1267, %v1279
    %v1281 = vpop.f32.mrf.mxu0
    %1282 = vdwg.mxu0
    %1283 = vmatpush.bf16.msra.mxu0 %v870
    %1284 = vmatpush.bf16.msra.mxu0 %v867
    %1285 = vmatpush.bf16.msra.mxu0 %v864
    %1286 = vmatpush.bf16.msra.mxu0 %v861
    %1287 = vmatpush.bf16.msra.mxu0 %v858
    %1288 = vmatpush.bf16.msra.mxu0 %v855
    %1289 = vmatpush.bf16.msra.mxu0 %v852
    %1290 = vmatpush.bf16.msra.mxu0 %v849
    %1291 = vmatmul.bf16.gmra.mxu0 %v54
    %v1292 = vpop.f32.mrf.mxu0
    %v1293 = vadd.f32 %v1280, %v1292
    %v1294 = vpop.f32.mrf.mxu0
    %1295 = vdwg.mxu0
    %1296 = vmatpush.bf16.msra.mxu0 %v894
    %1297 = vmatpush.bf16.msra.mxu0 %v891
    %1298 = vmatpush.bf16.msra.mxu0 %v888
    %1299 = vmatpush.bf16.msra.mxu0 %v885
    %1300 = vmatpush.bf16.msra.mxu0 %v882
    %1301 = vmatpush.bf16.msra.mxu0 %v879
    %1302 = vmatpush.bf16.msra.mxu0 %v876
    %1303 = vmatpush.bf16.msra.mxu0 %v873
    %1304 = vmatmul.bf16.gmra.mxu0 %v55
    %v1305 = vpop.f32.mrf.mxu0
    %v1306 = vadd.f32 %v1293, %v1305
    %v1307 = vpop.f32.mrf.mxu0
    %1308 = vdwg.mxu0
    %1309 = vmatpush.bf16.msra.mxu0 0
    %1310 = vmatpush.bf16.msra.mxu0 0
    %1311 = vmatpush.bf16.msra.mxu0 0
    %1312 = vmatpush.bf16.msra.mxu0 0
    %1313 = vmatpush.bf16.msra.mxu0 0
    %1314 = vmatpush.bf16.msra.mxu0 0
    %1315 = vmatpush.bf16.msra.mxu0 0
    %1316 = vmatpush.bf16.msra.mxu0 %v897
    %1317 = vmatmul.bf16.gmra.mxu0 %v1047
    %v1318 = vpop.f32.mrf.mxu0
    %v1319 = vadd.f32 %v1306, %v1318
    %v1320 = vpop.f32.mrf.mxu0
    %1321 = vdwg.mxu0
    %v1322 = vmax.f32 %v1137, 0.0
    %v1323 = vmax.f32 %v1228, 0.0
    %v1324 = vmax.f32 %v1319, 0.0
    %v1325 = vpack.c.bf16 %v1322, %v1322
    %v1326 = vpack.c.bf16 %v1323, %v1323
    %v1327 = vpack.c.bf16 %v1324, %v1324
    %v1328 = vld [vmem:[%s3] sm:$0xf]
    %v1329 = vld [vmem:[%s3 + $0x4] sm:$0xf]
    %v1330 = vld [vmem:[%s3 + $0x8] sm:$0xf]
    %v1331 = vld [vmem:[%s3 + $0xc] sm:$0xf]
    %v1332 = vld [vmem:[%s3 + $0x10] sm:$0xf]
    %v1333 = vld [vmem:[%s3 + $0x14] sm:$0xf]
    %v1334 = vld [vmem:[%s3 + $0x18] sm:$0xf]
    %v1335 = vld [vmem:[%s3 + $0x1c] sm:$0xf]
    %v1336 = vld [vmem:[%s3 + $0x20] sm:$0xf]
    %v1337 = vld [vmem:[%s3 + $0x24] sm:$0xf]
    %v1338 = vld [vmem:[%s3 + $0x28] sm:$0xf]
    %v1339 = vld [vmem:[%s3 + $0x2c] sm:$0xf]
    %v1340 = vld [vmem:[%s3 + $0x30] sm:$0xf]
    %v1341 = vld [vmem:[%s3 + $0x34] sm:$0xf]
    %v1342 = vld [vmem:[%s3 + $0x38] sm:$0xf]
    %v1343 = vld [vmem:[%s3 + $0x3c] sm:$0xf]
    %v1344 = vld [vmem:[%s3 + $0x40] sm:$0xf]
    %v1345 = vld [vmem:[%s3 + $0x44] sm:$0xf]
    %v1346 = vld [vmem:[%s3 + $0x48] sm:$0xf]
    %v1347 = vld [vmem:[%s3 + $0x4c] sm:$0xf]
    %v1348 = vld [vmem:[%s3 + $0x50] sm:$0xf]
    %v1349 = vld [vmem:[%s3 + $0x54] sm:$0xf]
    %v1350 = vld [vmem:[%s3 + $0x58] sm:$0xf]
    %v1351 = vld [vmem:[%s3 + $0x5c] sm:$0xf]
    %v1352 = vld [vmem:[%s3 + $0x60] sm:$0xf]
    %v1353 = vld [vmem:[%s3 + $0x64] sm:$0xf]
    %v1354 = vld [vmem:[%s3 + $0x68] sm:$0xf]
    %v1355 = vld [vmem:[%s3 + $0x6c] sm:$0xf]
    %v1356 = vld [vmem:[%s3 + $0x70] sm:$0xf]
    %v1357 = vld [vmem:[%s3 + $0x74] sm:$0xf]
    %v1358 = vld [vmem:[%s3 + $0x78] sm:$0xf]
    %v1359 = vld [vmem:[%s3 + $0x7c] sm:$0xf]
    %v1360 = vld [vmem:[%s3 + $0x80] sm:$0xf]
    %v1361 = vld [vmem:[%s3 + $0x84] sm:$0xf]
    %v1362 = vld [vmem:[%s3 + $0x88] sm:$0xf]
    %v1363 = vld [vmem:[%s3 + $0x8c] sm:$0xf]
    %v1364 = vld [vmem:[%s3 + $0x90] sm:$0xf]
    %v1365 = vld [vmem:[%s3 + $0x94] sm:$0xf]
    %v1366 = vld [vmem:[%s3 + $0x98] sm:$0xf]
    %v1367 = vld [vmem:[%s3 + $0x9c] sm:$0xf]
    %v1368 = vld [vmem:[%s3 + $0xa0] sm:$0xf]
    %v1369 = vld [vmem:[%s3 + $0xa4] sm:$0xf]
    %v1370 = vld [vmem:[%s3 + $0xa8] sm:$0xf]
    %v1371 = vld [vmem:[%s3 + $0xac] sm:$0xf]
    %v1372 = vld [vmem:[%s3 + $0xb0] sm:$0xf]
    %v1373 = vld [vmem:[%s3 + $0xb4] sm:$0xf]
    %v1374 = vld [vmem:[%s3 + $0xb8] sm:$0xf]
    %v1375 = vld [vmem:[%s3 + $0xbc] sm:$0xf]
    %v1376 = vld [vmem:[%s4] sm:$0x1]
    %v1378 = vperm.slane %v1376, 0
    %v1428 = vunpack.c.l.b16 %v1328
    %v1429 = vunpack.c.l.b16 %v1329
    %v1430 = vunpack.c.l.b16 %v1330
    %v1431 = vunpack.c.l.b16 %v1331
    %v1432 = vunpack.c.l.b16 %v1332
    %v1433 = vunpack.c.l.b16 %v1333
    %v1434 = vunpack.c.l.b16 %v1334
    %v1435 = vunpack.c.l.b16 %v1335
    %v1436 = vunpack.c.l.b16 %v1336
    %v1437 = vunpack.c.l.b16 %v1337
    %v1438 = vunpack.c.l.b16 %v1338
    %v1439 = vunpack.c.l.b16 %v1339
    %v1440 = vunpack.c.l.b16 %v1340
    %v1441 = vunpack.c.l.b16 %v1341
    %v1442 = vunpack.c.l.b16 %v1342
    %v1443 = vunpack.c.l.b16 %v1343
    %v1444 = vunpack.c.l.b16 %v1344
    %v1445 = vunpack.c.l.b16 %v1345
    %v1446 = vunpack.c.l.b16 %v1346
    %v1447 = vunpack.c.l.b16 %v1347
    %v1448 = vunpack.c.l.b16 %v1348
    %v1449 = vunpack.c.l.b16 %v1349
    %v1450 = vunpack.c.l.b16 %v1350
    %v1451 = vunpack.c.l.b16 %v1351
    %v1452 = vunpack.c.l.b16 %v1352
    %v1453 = vunpack.c.l.b16 %v1353
    %v1454 = vunpack.c.l.b16 %v1354
    %v1455 = vunpack.c.l.b16 %v1355
    %v1456 = vunpack.c.l.b16 %v1356
    %v1457 = vunpack.c.l.b16 %v1357
    %v1458 = vunpack.c.l.b16 %v1358
    %v1459 = vunpack.c.l.b16 %v1359
    %v1460 = vunpack.c.l.b16 %v1360
    %v1461 = vunpack.c.l.b16 %v1361
    %v1462 = vunpack.c.l.b16 %v1362
    %v1463 = vunpack.c.l.b16 %v1363
    %v1464 = vunpack.c.l.b16 %v1364
    %v1465 = vunpack.c.l.b16 %v1365
    %v1466 = vunpack.c.l.b16 %v1366
    %v1467 = vunpack.c.l.b16 %v1367
    %v1468 = vunpack.c.l.b16 %v1368
    %v1469 = vunpack.c.l.b16 %v1369
    %v1470 = vunpack.c.l.b16 %v1370
    %v1471 = vunpack.c.l.b16 %v1371
    %v1472 = vunpack.c.l.b16 %v1372
    %v1473 = vunpack.c.l.b16 %v1373
    %v1474 = vunpack.c.l.b16 %v1374
    %v1475 = vunpack.c.l.b16 %v1375
    %v1476 = vpack.c.b16 %v1429, %v1428
    %v1477 = vpack.c.b16 %v1431, %v1430
    %v1478 = vpack.c.b16 %v1433, %v1432
    %v1479 = vpack.c.b16 %v1435, %v1434
    %v1480 = vpack.c.b16 %v1437, %v1436
    %v1481 = vpack.c.b16 %v1439, %v1438
    %v1482 = vpack.c.b16 %v1441, %v1440
    %v1483 = vpack.c.b16 %v1443, %v1442
    %v1484 = vpack.c.b16 %v1445, %v1444
    %v1485 = vpack.c.b16 %v1447, %v1446
    %v1486 = vpack.c.b16 %v1449, %v1448
    %v1487 = vpack.c.b16 %v1451, %v1450
    %v1488 = vpack.c.b16 %v1453, %v1452
    %v1489 = vpack.c.b16 %v1455, %v1454
    %v1490 = vpack.c.b16 %v1457, %v1456
    %v1491 = vpack.c.b16 %v1459, %v1458
    %v1492 = vpack.c.b16 %v1461, %v1460
    %v1493 = vpack.c.b16 %v1463, %v1462
    %v1494 = vpack.c.b16 %v1465, %v1464
    %v1495 = vpack.c.b16 %v1467, %v1466
    %v1496 = vpack.c.b16 %v1469, %v1468
    %v1497 = vpack.c.b16 %v1471, %v1470
    %v1498 = vpack.c.b16 %v1473, %v1472
    %v1499 = vpack.c.b16 %v1475, %v1474
    %1524 = vmatpush.bf16.msra.mxu0 %v1483
    %1525 = vmatpush.bf16.msra.mxu0 %v1482
    %1526 = vmatpush.bf16.msra.mxu0 %v1481
    %1527 = vmatpush.bf16.msra.mxu0 %v1480
    %1528 = vmatpush.bf16.msra.mxu0 %v1479
    %1529 = vmatpush.bf16.msra.mxu0 %v1478
    %1530 = vmatpush.bf16.msra.mxu0 %v1477
    %1531 = vmatpush.bf16.msra.mxu0 %v1476
    %1532 = vmatmul.bf16.gmra.mxu0 %v1325
    %v1533 = vpop.f32.mrf.mxu0
    %v1534 = vadd.f32 %v1378, %v1533
    %v1535 = vpop.f32.mrf.mxu0
    %1536 = vdwg.mxu0
    %1537 = vmatpush.bf16.msra.mxu0 %v1491
    %1538 = vmatpush.bf16.msra.mxu0 %v1490
    %1539 = vmatpush.bf16.msra.mxu0 %v1489
    %1540 = vmatpush.bf16.msra.mxu0 %v1488
    %1541 = vmatpush.bf16.msra.mxu0 %v1487
    %1542 = vmatpush.bf16.msra.mxu0 %v1486
    %1543 = vmatpush.bf16.msra.mxu0 %v1485
    %1544 = vmatpush.bf16.msra.mxu0 %v1484
    %1545 = vmatmul.bf16.gmra.mxu0 %v1326
    %v1546 = vpop.f32.mrf.mxu0
    %v1547 = vadd.f32 %v1534, %v1546
    %v1548 = vpop.f32.mrf.mxu0
    %1549 = vdwg.mxu0
    %1550 = vmatpush.bf16.msra.mxu0 %v1499
    %1551 = vmatpush.bf16.msra.mxu0 %v1498
    %1552 = vmatpush.bf16.msra.mxu0 %v1497
    %1553 = vmatpush.bf16.msra.mxu0 %v1496
    %1554 = vmatpush.bf16.msra.mxu0 %v1495
    %1555 = vmatpush.bf16.msra.mxu0 %v1494
    %1556 = vmatpush.bf16.msra.mxu0 %v1493
    %1557 = vmatpush.bf16.msra.mxu0 %v1492
    %1558 = vmatmul.bf16.gmra.mxu0 %v1327
    %v1559 = vpop.f32.mrf.mxu0
    %v1560 = vadd.f32 %v1547, %v1559
    %v1561 = vpop.f32.mrf.mxu0
    %1562 = vdwg.mxu0
    %v1563 = vmax.f32 %v1560, 0.0
    %v1564 = vpack.c.bf16 %v1563, %v1563
    %v1565 = vld [vmem:[%s5] sm:$0xf]
    %v1566 = vld [vmem:[%s5 + $0x4] sm:$0xf]
    %v1567 = vld [vmem:[%s5 + $0x8] sm:$0xf]
    %v1568 = vld [vmem:[%s5 + $0xc] sm:$0xf]
    %v1569 = vld [vmem:[%s5 + $0x10] sm:$0xf]
    %v1570 = vld [vmem:[%s5 + $0x14] sm:$0xf]
    %v1571 = vld [vmem:[%s5 + $0x18] sm:$0xf]
    %v1572 = vld [vmem:[%s5 + $0x1c] sm:$0xf]
    %v1573 = vld [vmem:[%s5 + $0x20] sm:$0xf]
    %v1574 = vld [vmem:[%s5 + $0x24] sm:$0xf]
    %v1575 = vld [vmem:[%s5 + $0x28] sm:$0xf]
    %v1576 = vld [vmem:[%s5 + $0x2c] sm:$0xf]
    %v1577 = vld [vmem:[%s5 + $0x30] sm:$0xf]
    %v1578 = vld [vmem:[%s5 + $0x34] sm:$0xf]
    %v1579 = vld [vmem:[%s5 + $0x38] sm:$0xf]
    %v1580 = vld [vmem:[%s5 + $0x3c] sm:$0xf]
    %v1581 = vld [vmem:[%s6] sm:$0x1]
    %v1583 = vperm.slane %v1581, 0
    %v1601 = vunpack.c.l.b16 %v1565
    %v1602 = vunpack.c.l.b16 %v1566
    %v1603 = vunpack.c.l.b16 %v1567
    %v1604 = vunpack.c.l.b16 %v1568
    %v1605 = vunpack.c.l.b16 %v1569
    %v1606 = vunpack.c.l.b16 %v1570
    %v1607 = vunpack.c.l.b16 %v1571
    %v1608 = vunpack.c.l.b16 %v1572
    %v1609 = vunpack.c.l.b16 %v1573
    %v1610 = vunpack.c.l.b16 %v1574
    %v1611 = vunpack.c.l.b16 %v1575
    %v1612 = vunpack.c.l.b16 %v1576
    %v1613 = vunpack.c.l.b16 %v1577
    %v1614 = vunpack.c.l.b16 %v1578
    %v1615 = vunpack.c.l.b16 %v1579
    %v1616 = vunpack.c.l.b16 %v1580
    %v1617 = vpack.c.b16 %v1602, %v1601
    %v1618 = vpack.c.b16 %v1604, %v1603
    %v1619 = vpack.c.b16 %v1606, %v1605
    %v1620 = vpack.c.b16 %v1608, %v1607
    %v1621 = vpack.c.b16 %v1610, %v1609
    %v1622 = vpack.c.b16 %v1612, %v1611
    %v1623 = vpack.c.b16 %v1614, %v1613
    %v1624 = vpack.c.b16 %v1616, %v1615
    %1633 = vmatpush.bf16.msra.mxu0 %v1624
    %1634 = vmatpush.bf16.msra.mxu0 %v1623
    %1635 = vmatpush.bf16.msra.mxu0 %v1622
    %1636 = vmatpush.bf16.msra.mxu0 %v1621
    %1637 = vmatpush.bf16.msra.mxu0 %v1620
    %1638 = vmatpush.bf16.msra.mxu0 %v1619
    %1639 = vmatpush.bf16.msra.mxu0 %v1618
    %1640 = vmatpush.bf16.msra.mxu0 %v1617
    %1641 = vmatmul.bf16.gmra.mxu0 %v1564
    %v1642 = vpop.f32.mrf.mxu0
    %v1643 = vadd.f32 %v1583, %v1642
    %v1644 = vpop.f32.mrf.mxu0
    %1645 = vdwg.mxu0
    %v1646 = vlaneseq
    %v1647 = vand.u32 %v1646, 127
    %vm1648 = vcmp.lt.s32.totalorder %v1647, 10
    %v1649 = vsel %vm1648, %v1643, -inf
    %1650 = vmax.xlane.f32.xlu0 %v1649
    %v1651 = vpop.xlane.xlu0 %1650
    %v1652 = vsub.f32 %v1649, %v1651
    %v1653 = vmul.f32 %v1652, 1.442695
    %v1654 = vpow.pop %v1653
    %v1655 = vsel %vm1648, %v1654, 0.0
    %1656 = vadd.xlane.f32.xlu0 %v1655
    %v1657 = vpop.xlane.xlu0 %1656
    %v1658 = vlog2.pop %v1657
    %v1659 = vmul.f32 %v1658, 0.6931472
    %v1660 = vsub.f32 %v1652, %v1659
    %v1661 = vsel %vm1648, %v1660, 0.0
    %1662 = vst [vmem:[%s7] sm:$0xff] %v1661
    // Predicated region
    $region34: #{_forward_jit.1} parent=1 // pred_check
      _
    $region35: #{_forward_jit.1} parent=1 // pred_check_branch
      %1664 = sbr.rel (0) target = $region37
    $region36: #{_forward_jit.1} parent=1 // pred_region
      _
    $region37: #{_forward_jit.1} parent=1 // pred_fallthru
      _
    // Predicated region
    $region38: #{_forward_jit.1} parent=1 // pred_check
      _
    $region39: #{_forward_jit.1} parent=1 // pred_check_branch
      %1666 = sbr.rel (0) target = $region41
    $region40: #{_forward_jit.1} parent=1 // pred_region
      _
    $region41: #{_forward_jit.1} parent=1 // pred_fallthru
      _
    %1667 = vsyncpa [#allocation3], 1

</llo_original>
